<compile_context>
chip_gen: v6e
topology: v6e:2x2x1
jax: 0.10.0
libtpu: 0.0.40
codegen_flags: <defaults>
</compile_context>

<pallas_src>
import functools

import jax
import jax.numpy as jnp
from jax import lax
from jax.experimental import pallas as pl
from jax.experimental.pallas import tpu as pltpu


def _round_up(x, m):
    return ((x + m - 1) // m) * m


def _choose_tile(dim, candidates, align):
    """Largest candidate <= round_up(dim, align); caller then pads `dim` up to
    a multiple of the returned tile (tile first, pad second)."""
    d = _round_up(max(int(dim), 1), align)
    for c in candidates:          # descending
        if d >= c:
            return c
    return d


def _hash_bits(seed_u32, rows, cols):
    """Counter-based per-element uint32 hash (murmur3 fmix32 finalizer)."""
    h = (rows * jnp.uint32(0x9E3779B1)) ^ (cols * jnp.uint32(0x85EBCA77))
    h = h ^ seed_u32
    h = h ^ (h >> 16)
    h = h * jnp.uint32(0x7FEB352D)
    h = h ^ (h >> 15)
    h = h * jnp.uint32(0x846CA68B)
    h = h ^ (h >> 16)
    return h


def _linear_dropout_kernel(seed_ref, x_ref, w_ref, b_ref, o_ref, acc_ref,
                           *, training, p, tm, tn):
    # program_id / num_programs must be read at the kernel top level (they do
    # not lower inside pl.when sub-jaxprs in interpret mode); the finalize
    # branch below just closes over these scalars.
    i = pl.program_id(0)
    j = pl.program_id(1)
    k = pl.program_id(2)
    k_last = pl.num_programs(2) - 1

    # (tm, tk) @ (tk, tn) on the MXU with f32 accumulation.  The weight
    # arrives pre-transposed to (K, N): no in-kernel transpose.
    contrib = jnp.dot(x_ref[...], w_ref[...],
                      preferred_element_type=jnp.float32)

    @pl.when(k == 0)
    def _():
        acc_ref[...] = contrib          # skip zero-init + add on the first step

    @pl.when(k != 0)
    def _():
        acc_ref[...] += contrib

    @pl.when(k == k_last)
    def _():
        y = acc_ref[...] + b_ref[...]   # bias only in the finalize step
        if training and p >= 1.0:
            y = jnp.zeros_like(y)
        elif training and p > 0.0:
            row = (i * tm + lax.broadcasted_iota(jnp.int32, (tm, tn), 0)
                   ).astype(jnp.uint32)
            col = (j * tn + lax.broadcasted_iota(jnp.int32, (tm, tn), 1)
                   ).astype(jnp.uint32)
            bits = _hash_bits(seed_ref[0].astype(jnp.uint32), row, col)
            thresh = jnp.uint32(min(int(round(p * 4294967296.0)), 4294967295))
            keep = bits >= thresh       # P(keep) = 1 - p
            y = jnp.where(keep, y * (1.0 / (1.0 - p)), jnp.zeros_like(y))
        o_ref[...] = y.astype(o_ref.dtype)


class PallasLinear:
    """y = Dropout(p)(x @ W^T + b); weight is prepared (transposed + padded) once."""

    _VMEM_BUDGET = 12 * 1024 * 1024   # fits the smallest scoped default (v5e 16 MiB)
    _TM_MAX = 256

    def __init__(self, weight, bias, *, p=0.5, cast_bf16=True, out_dtype=None):
        N, K = weight.shape
        assert bias.shape == (N,)
        self.out_units, self.in_units = N, K
        self.p = float(p)
        self.in_dtype = jnp.bfloat16 if cast_bf16 else jnp.float32
        self.out_dtype = out_dtype
        in_bytes = jnp.dtype(self.in_dtype).itemsize

        # Tile selection: prefer 256/512/1024 multiples (v6e/v7x MXU), then pad.
        tn = _choose_tile(N, (512, 256, 128), 128)
        tk = _choose_tile(K, (1024, 512, 256, 128), 128)

        def vmem_bytes(tk_, tn_):
            return (2 * self._TM_MAX * tk_ * in_bytes    # x (double-buffered)
                    + 2 * tk_ * tn_ * in_bytes           # W^T (double-buffered)
                    + 2 * self._TM_MAX * tn_ * 4         # out (double-buffered)
                    + self._TM_MAX * tn_ * 4             # f32 accumulator
                    + 2 * tn_ * 4)                       # bias
        while vmem_bytes(tk, tn) > self._VMEM_BUDGET and tk > 128:
            tk //= 2
        while vmem_bytes(tk, tn) > self._VMEM_BUDGET and tn > 128:
            tn //= 2
        self.tn, self.tk = tn, tk
        self.N_pad = _round_up(N, tn)
        self.K_pad = _round_up(K, tk)

        # Hoisted weight transform: transpose to (K, N), pad, cast — ONCE.
        wt = jnp.swapaxes(weight, 0, 1).astype(self.in_dtype)
        self.w_p = jnp.zeros((self.K_pad, self.N_pad), self.in_dtype
                             ).at[:K, :N].set(wt)
        self.b_p = jnp.zeros((1, self.N_pad), jnp.float32
                             ).at[0, :N].set(bias.astype(jnp.float32))

    def __call__(self, x, *, seed=0, training=False):
        B, K = x.shape
        assert K == self.in_units
        out_dtype = self.out_dtype if self.out_dtype is not None else x.dtype

        m_align = 16 if self.in_dtype == jnp.bfloat16 else 8
        tm = _choose_tile(B, (256, 128, 64, 32, 16, 8), m_align)
        M_pad = _round_up(B, tm)

        # Give v7x's two TensorCores >= 2 parallel (i, j) tiles when possible.
        tn = self.tn
        if (M_pad // tm) * (self.N_pad // tn) < 2 and tn >= 256:
            tn //= 2

        if (M_pad, self.K_pad) == (B, K) and x.dtype == self.in_dtype:
            x_p = x                                   # already aligned: no pad copy
        else:
            x_p = jnp.zeros((M_pad, self.K_pad), self.in_dtype
                            ).at[:B, :K].set(x.astype(self.in_dtype))

        grid = (M_pad // tm, self.N_pad // tn, self.K_pad // self.tk)
        seed_arr = jnp.array([seed], dtype=jnp.int32)
        kernel = functools.partial(_linear_dropout_kernel,
                                   training=training, p=self.p, tm=tm, tn=tn)

        out_p = pl.pallas_call(
            kernel,
            out_shape=jax.ShapeDtypeStruct((M_pad, self.N_pad), out_dtype),
            grid_spec=pltpu.PrefetchScalarGridSpec(
                num_scalar_prefetch=1,                        # seed -> SMEM
                grid=grid,
                in_specs=[
                    pl.BlockSpec((tm, self.tk), lambda i, j, k, s: (i, k)),  # x
                    pl.BlockSpec((self.tk, tn), lambda i, j, k, s: (k, j)),  # W^T
                    pl.BlockSpec((1, tn), lambda i, j, k, s: (0, j)),        # bias
                ],
                out_specs=pl.BlockSpec((tm, tn), lambda i, j, k, s: (i, j)),
                scratch_shapes=[pltpu.VMEM((tm, tn), jnp.float32)],
            ),
            compiler_params=pltpu.CompilerParams(
                dimension_semantics=("parallel", "parallel", "arbitrary")),
        )(seed_arr, x_p, self.w_p, self.b_p)

        return out_p[:B, :self.out_units]


if __name__ == "__main__":
    key = jax.random.PRNGKey(0)
    k_x, k_w = jax.random.split(key)

    B, IN_UNITS, OUT_UNITS = 8, 32, 64

    x = jax.random.normal(k_x, (B, IN_UNITS), dtype=jnp.float32)
    # nn.init.normal_(weight, 0, 0.0001); nn.init.constant_(bias, 0)
    w = jax.random.normal(k_w, (OUT_UNITS, IN_UNITS), dtype=jnp.float32) * 1e-4
    b = jnp.zeros((OUT_UNITS,), dtype=jnp.float32)

    # --- f32 path: eval-mode (dropout = identity) check vs pure-JAX ref -----
    lin_f32 = PallasLinear(w, b, cast_bf16=False)
    y_eval = jax.block_until_ready(lin_f32(x, training=False))
    ref_f32 = x @ w.T + b
    assert y_eval.shape == (B, OUT_UNITS)
    assert jnp.allclose(y_eval, ref_f32, rtol=1e-2, atol=1e-5), "f32 eval mismatch"

    # --- default bf16-input path (f32 accumulation, f32 output) -------------
    lin = PallasLinear(w, b)                      # cast_bf16=True by default
    ref_b = jnp.dot(x.astype(jnp.bfloat16), w.T.astype(jnp.bfloat16),
                    preferred_element_type=jnp.float32) + b
    y_eval_b = jax.block_until_ready(lin(x, training=False))
    assert jnp.allclose(y_eval_b, ref_b, rtol=1e-3, atol=1e-7), "bf16 eval mismatch"

    # Training-mode forward (inverted dropout p=0.5 applied in-kernel).
    y_train = jax.block_until_ready(lin(x, seed=1234, training=True))
    ok = jnp.all((y_train == 0.0)
                 | jnp.isclose(y_train, 2.0 * ref_b, rtol=1e-3, atol=1e-7))
    assert bool(ok), "train-mode dropout mismatch"
    n_zero = int(jnp.sum(y_train == 0.0))
    assert 0 < n_zero < y_train.size, "dropout mask is degenerate"

    # Different seeds -> different masks (determinism + seed sensitivity).
    y_train2 = jax.block_until_ready(lin(x, seed=4321, training=True))
    assert not bool(jnp.all(y_train == y_train2)), "seed has no effect"

    print("KERNEL_OK")
</pallas_src>

<mosaic_0001>
module attributes {stable_mosaic.version = 11 : i64} {
  func.func @_linear_dropout_kernel(%arg0: i32, %arg1: i32, %arg2: i32, %arg3: memref<1xi32, #tpu.memory_space<smem>>, %arg4: memref<8x128xf32, #tpu.memory_space<vmem>>, %arg5: memref<128x128xf32, #tpu.memory_space<vmem>>, %arg6: memref<1x128xf32, #tpu.memory_space<vmem>>, %arg7: memref<8x128xf32, #tpu.memory_space<vmem>>, %arg8: memref<8x128xf32, #tpu.memory_space<vmem>>) attributes {dimension_semantics = [#tpu.dimension_semantics<parallel>, #tpu.dimension_semantics<parallel>, #tpu.dimension_semantics<arbitrary>], iteration_bounds = array<i64: 1, 1, 1>, scalar_prefetch = 1 : i64, scratch_operands = 1 : i64, tpu.core_type = #tpu.core_type<tc>, window_params = [{transform_indices = @transform_0, window_bounds = array<i64: 8, 128>}, {transform_indices = @transform_1, window_bounds = array<i64: 128, 128>}, {transform_indices = @transform_2, window_bounds = array<i64: 1, 128>}, {transform_indices = @transform_3, window_bounds = array<i64: 8, 128>}]} {
    %c0 = arith.constant 0 : index
    %c0_0 = arith.constant 0 : index
    %0 = vector.load %arg4[%c0, %c0_0] : memref<8x128xf32, #tpu.memory_space<vmem>>, vector<8x128xf32>
    %c0_1 = arith.constant 0 : index
    %c0_2 = arith.constant 0 : index
    %1 = vector.load %arg5[%c0_1, %c0_2] : memref<128x128xf32, #tpu.memory_space<vmem>>, vector<128x128xf32>
    %cst = arith.constant dense<0.000000e+00> : vector<8x128xf32>
    %2 = tpu.matmul %0, %1, %cst {dimension_numbers = #tpu.dot_dimension_numbers<[1], [0], [0], [1], [0, 0, 1, 1], [], []>} : vector<8x128xf32>, vector<128x128xf32>, vector<8x128xf32> -> vector<8x128xf32>
    %c0_i32 = arith.constant 0 : i32
    %3 = arith.cmpi eq, %arg2, %c0_i32 : i32
    %4 = arith.extui %3 : i1 to i32
    %c0_i32_3 = arith.constant 0 : i32
    %5 = arith.cmpi ne, %4, %c0_i32_3 : i32
    scf.if %5 {
      %c0_8 = arith.constant 0 : index
      %c0_9 = arith.constant 0 : index
      %12 = vector.load %arg8[%c0_8, %c0_9] : memref<8x128xf32, #tpu.memory_space<vmem>>, vector<8x128xf32>
      tpu.vector_store %arg8[%c0_8, %c0_9], %2 {strides = array<i32>} : memref<8x128xf32, #tpu.memory_space<vmem>>, vector<8x128xf32>,
    } else {
    }
    %c0_i32_4 = arith.constant 0 : i32
    %6 = arith.cmpi ne, %arg2, %c0_i32_4 : i32
    %7 = arith.extui %6 : i1 to i32
    %c0_i32_5 = arith.constant 0 : i32
    %8 = arith.cmpi ne, %7, %c0_i32_5 : i32
    scf.if %8 {
      %c0_8 = arith.constant 0 : index
      %c0_9 = arith.constant 0 : index
      %12 = vector.load %arg8[%c0_8, %c0_9] : memref<8x128xf32, #tpu.memory_space<vmem>>, vector<8x128xf32>
      %13 = arith.addf %12, %2 : vector<8x128xf32>
      %c0_10 = arith.constant 0 : index
      %c0_11 = arith.constant 0 : index
      %14 = vector.load %arg8[%c0_10, %c0_11] : memref<8x128xf32, #tpu.memory_space<vmem>>, vector<8x128xf32>
      tpu.vector_store %arg8[%c0_10, %c0_11], %13 {strides = array<i32>} : memref<8x128xf32, #tpu.memory_space<vmem>>, vector<8x128xf32>,
    } else {
    }
    %c0_i32_6 = arith.constant 0 : i32
    %9 = arith.cmpi eq, %arg2, %c0_i32_6 : i32
    %10 = arith.extui %9 : i1 to i32
    %c0_i32_7 = arith.constant 0 : i32
    %11 = arith.cmpi ne, %10, %c0_i32_7 : i32
    scf.if %11 {
      %c0_8 = arith.constant 0 : index
      %c0_9 = arith.constant 0 : index
      %12 = vector.load %arg8[%c0_8, %c0_9] : memref<8x128xf32, #tpu.memory_space<vmem>>, vector<8x128xf32>
      %c0_10 = arith.constant 0 : index
      %c0_11 = arith.constant 0 : index
      %13 = vector.load %arg6[%c0_10, %c0_11] : memref<1x128xf32, #tpu.memory_space<vmem>>, vector<1x128xf32>
      %14 = vector.broadcast %13 : vector<1x128xf32> to vector<8x128xf32>
      %15 = arith.addf %12, %14 : vector<8x128xf32>
      %c0_12 = arith.constant 0 : index
      %c0_13 = arith.constant 0 : index
      %16 = vector.load %arg7[%c0_12, %c0_13] : memref<8x128xf32, #tpu.memory_space<vmem>>, vector<8x128xf32>
      tpu.vector_store %arg7[%c0_12, %c0_13], %15 {strides = array<i32>} : memref<8x128xf32, #tpu.memory_space<vmem>>, vector<8x128xf32>,
    } else {
    }
    return
  }
  func.func @transform_0(%arg0: i32, %arg1: i32, %arg2: i32, %arg3: memref<1xi32, #tpu.memory_space<smem>>) -> (i32, i32) {
    %c0_i32 = arith.constant 0 : i32
    return %arg0, %arg2 : i32, i32
  }
  func.func @transform_1(%arg0: i32, %arg1: i32, %arg2: i32, %arg3: memref<1xi32, #tpu.memory_space<smem>>) -> (i32, i32) {
    %c0_i32 = arith.constant 0 : i32
    return %arg2, %arg1 : i32, i32
  }
  func.func @transform_2(%arg0: i32, %arg1: i32, %arg2: i32, %arg3: memref<1xi32, #tpu.memory_space<smem>>) -> (i32, i32) {
    %c0_i32 = arith.constant 0 : i32
    %c0_i32_0 = arith.constant 0 : i32
    return %c0_i32, %arg1 : i32, i32
  }
  func.func @transform_3(%arg0: i32, %arg1: i32, %arg2: i32, %arg3: memref<1xi32, #tpu.memory_space<smem>>) -> (i32, i32) {
    %c0_i32 = arith.constant 0 : i32
    return %arg0, %arg1 : i32, i32
  }
}

</mosaic_0001>

<llo_original>
// kernel: tpu_custom_call.1
$region0: #{tpu_custom_call.1}
  #allocation0 [shape = 'u32[]', space=smem, size = 0x4, offset = 0x4, fixed_abs, tag = 'smem constant byte address 0x4 - core index']
  #allocation1 [shape = 'u32[144,128]{1,0:T(1,128)}', space=vmem, size = 0x12000, scoped, tag = 'internal scratch']
  #allocation2 [shape = 'f32[8,128]{1,0:T(8,128)}', space=vmem, size = 0x1000, scoped, tag = 'scratch operand']
  #allocation3 [shape = 's32[1]{0}', space=sflag, size = 0x4, scoped, tag = 'scoped memory for tpu_custom_call.1']
  #allocation4 [shape = 's32[1]{0:T(128)S(6)}', space=smem, size = 0x200, scoped, tag = 'prefetched SMEM operand 0']
  %s0 = inlined_call_operand.<no memory space> [shape: s32[1], index: 0, kind: input, shape index: {}]
  %s1 = inlined_call_operand.hbm [shape: f32[8,128], index: 1, kind: input, shape index: {}]
  %s2 = inlined_call_operand.hbm [shape: f32[128,128], index: 2, kind: input, shape index: {}]
  %s3 = inlined_call_operand.vmem [shape: f32[1,128], index: 3, kind: input, shape index: {}]
  %s4 = inlined_call_operand.hbm [shape: f32[8,128], index: 4, kind: output, shape index: {}]
  %s5 = sld [smem:[#allocation0]]
  $region42: #{tpu_custom_call.1} parent=0
    _
  %s7 = ssub.s32 1, %s5
  %s8 = scalar_select 0, %s7, %s5
  %9 = sst [smem:[#allocation4]] %s0
  $region1: #{tpu_custom_call.1} parent=0
    #allocation5 [shape = 'u8[4096]{0}', space=vmem, size = 0x1000, scoped, tag = 'input window, operand 1, single buffered']
    #allocation6 [shape = 's32[1]{0}', space=sflag, size = 0x4, scoped, tag = 'scoped memory for tpu_custom_call.1']
    #allocation7 [shape = 's32[1]{0}', space=sflag, size = 0x4, scoped, tag = 'scoped memory for tpu_custom_call.1']
    #allocation8 [shape = 'u8[65536]{0}', space=vmem, size = 0x10000, scoped, tag = 'input window, operand 2, single buffered']
    #allocation9 [shape = 's32[1]{0}', space=sflag, size = 0x4, scoped, tag = 'scoped memory for tpu_custom_call.1']
    #allocation10 [shape = 'u8[4096]{0}', space=vmem, size = 0x1000, scoped, tag = 'output window, operand 0, single buffered']
    %10 = vsyncpa [#allocation6], 0
    %11 = vsyncpa [#allocation9], 0
    %12 = vsyncpa [#allocation7], 0
    // Predicated region
    $region2: #{tpu_custom_call.1} parent=1 // pred_check
      _
    $region3: #{tpu_custom_call.1} parent=1 // pred_check_branch
      %14 = sbr.rel (0) target = $region5
    $region4: #{tpu_custom_call.1} parent=1 // pred_region
      %s16 = ssub.s32 128, 128
      %17 = vsyncadd [#allocation6], %s16
      %s19 = sshll.u32 [#allocation5], 4
      %s20 = int_to_ptr.vmem [resolvable:$true] %s19
      %22 = dma.hbm_to_vmem [thread:$0]  %s1, 128, %s20, [#allocation6]
    $region5: #{tpu_custom_call.1} parent=1 // pred_fallthru
      _
    // Predicated region
    $region6: #{tpu_custom_call.1} parent=1 // pred_check
      _
    $region7: #{tpu_custom_call.1} parent=1 // pred_check_branch
      %24 = sbr.rel (0) target = $region9
    $region8: #{tpu_custom_call.1} parent=1 // pred_region
      %s26 = ssub.s32 2048, 2048
      %27 = vsyncadd [#allocation9], %s26
      %s28 = sshll.u32 [#allocation8], 4
      %s29 = int_to_ptr.vmem [resolvable:$true] %s28
      %34 = dma.hbm_to_vmem [thread:$0]  %s2, 2048, %s29, [#allocation9], 128, 128, 8
    $region9: #{tpu_custom_call.1} parent=1 // pred_fallthru
      _
    // Predicated region
    $region10: #{tpu_custom_call.1} parent=1 // pred_check
      _
    $region11: #{tpu_custom_call.1} parent=1 // pred_check_branch
      %36 = sbr.rel (0) target = $region13
    $region12: #{tpu_custom_call.1} parent=1 // pred_region
      _
    $region13: #{tpu_custom_call.1} parent=1 // pred_fallthru
      _
    // Predicated region
    $region14: #{tpu_custom_call.1} parent=1 // pred_check
      _
    $region15: #{tpu_custom_call.1} parent=1 // pred_check_branch
      %38 = sbr.rel (0) target = $region17
    $region16: #{tpu_custom_call.1} parent=1 // pred_region
      %39 = dma.done [#allocation6], 128
    $region17: #{tpu_custom_call.1} parent=1 // pred_fallthru
      _
    // Predicated region
    $region18: #{tpu_custom_call.1} parent=1 // pred_check
      _
    $region19: #{tpu_custom_call.1} parent=1 // pred_check_branch
      %41 = sbr.rel (0) target = $region21
    $region20: #{tpu_custom_call.1} parent=1 // pred_region
      %42 = dma.done [#allocation9], 2048
    $region21: #{tpu_custom_call.1} parent=1 // pred_fallthru
      _
    %v43 = vld [vmem:[#allocation5] sm:$0xff]
    %v44 = vld [vmem:[#allocation8] sm:$0xff]
    %v45 = vld [vmem:[#allocation8 + $0x8] sm:$0xff]
    %v46 = vld [vmem:[#allocation8 + $0x10] sm:$0xff]
    %v47 = vld [vmem:[#allocation8 + $0x18] sm:$0xff]
    %v48 = vld [vmem:[#allocation8 + $0x20] sm:$0xff]
    %v49 = vld [vmem:[#allocation8 + $0x28] sm:$0xff]
    %v50 = vld [vmem:[#allocation8 + $0x30] sm:$0xff]
    %v51 = vld [vmem:[#allocation8 + $0x38] sm:$0xff]
    %v52 = vld [vmem:[#allocation8 + $0x40] sm:$0xff]
    %v53 = vld [vmem:[#allocation8 + $0x48] sm:$0xff]
    %v54 = vld [vmem:[#allocation8 + $0x50] sm:$0xff]
    %v55 = vld [vmem:[#allocation8 + $0x58] sm:$0xff]
    %v56 = vld [vmem:[#allocation8 + $0x60] sm:$0xff]
    %v57 = vld [vmem:[#allocation8 + $0x68] sm:$0xff]
    %v58 = vld [vmem:[#allocation8 + $0x70] sm:$0xff]
    %v59 = vld [vmem:[#allocation8 + $0x78] sm:$0xff]
    %60 = vmatprep.subr.mxu0 0.0
    %61 = vmatpush1.msra.mxu0 %v59
    %62 = vmatprep.subr.mxu0 0.0
    %63 = vmatpush1.msra.mxu0 %v58
    %64 = vmatprep.subr.mxu0 0.0
    %65 = vmatpush1.msra.mxu0 %v57
    %66 = vmatprep.subr.mxu0 0.0
    %67 = vmatpush1.msra.mxu0 %v56
    %68 = vmatprep.subr.mxu0 0.0
    %69 = vmatpush1.msra.mxu0 %v55
    %70 = vmatprep.subr.mxu0 0.0
    %71 = vmatpush1.msra.mxu0 %v54
    %72 = vmatprep.subr.mxu0 0.0
    %73 = vmatpush1.msra.mxu0 %v53
    %74 = vmatprep.subr.mxu0 0.0
    %75 = vmatpush1.msra.mxu0 %v52
    %76 = vmatprep.subr.mxu0 0.0
    %77 = vmatpush1.msra.mxu0 %v51
    %78 = vmatprep.subr.mxu0 0.0
    %79 = vmatpush1.msra.mxu0 %v50
    %80 = vmatprep.subr.mxu0 0.0
    %81 = vmatpush1.msra.mxu0 %v49
    %82 = vmatprep.subr.mxu0 0.0
    %83 = vmatpush1.msra.mxu0 %v48
    %84 = vmatprep.subr.mxu0 0.0
    %85 = vmatpush1.msra.mxu0 %v47
    %86 = vmatprep.subr.mxu0 0.0
    %87 = vmatpush1.msra.mxu0 %v46
    %88 = vmatprep.subr.mxu0 0.0
    %89 = vmatpush1.msra.mxu0 %v45
    %90 = vmatprep.subr.mxu0 0.0
    %91 = vmatpush1.msra.mxu0 %v44
    %92 = vmatprep.subr.mxu0 0.0
    %93 = vmatpush2.msra.mxu0 0.0
    %94 = vmatprep.subr.mxu0 0.0
    %95 = vmatpush2.msra.mxu0 0.0
    %96 = vmatprep.subr.mxu0 0.0
    %97 = vmatpush2.msra.mxu0 0.0
    %98 = vmatprep.subr.mxu0 0.0
    %99 = vmatpush2.msra.mxu0 0.0
    %100 = vmatprep.subr.mxu0 0.0
    %101 = vmatpush2.msra.mxu0 0.0
    %102 = vmatprep.subr.mxu0 0.0
    %103 = vmatpush2.msra.mxu0 0.0
    %104 = vmatprep.subr.mxu0 0.0
    %105 = vmatpush2.msra.mxu0 0.0
    %106 = vmatprep.subr.mxu0 0.0
    %107 = vmatpush2.msra.mxu0 0.0
    %108 = vmatprep.subr.mxu0 0.0
    %109 = vmatpush2.msra.mxu0 0.0
    %110 = vmatprep.subr.mxu0 0.0
    %111 = vmatpush2.msra.mxu0 0.0
    %112 = vmatprep.subr.mxu0 0.0
    %113 = vmatpush2.msra.mxu0 0.0
    %114 = vmatprep.subr.mxu0 0.0
    %115 = vmatpush2.msra.mxu0 0.0
    %116 = vmatprep.subr.mxu0 0.0
    %117 = vmatpush2.msra.mxu0 0.0
    %118 = vmatprep.subr.mxu0 0.0
    %119 = vmatpush2.msra.mxu0 0.0
    %120 = vmatprep.subr.mxu0 0.0
    %121 = vmatpush2.msra.mxu0 0.0
    %122 = vmatprep.subr.mxu0 0.0
    %123 = vmatpush2.msra.mxu0 0.0
    %124 = vmatprep.mubr.f32.mxu0 0.0
    %125 = vmatmul.mubr.f32.gmra.mxu0 %v43
    %v126 = vpop.f32.mrf.mxu0
    %v127 = vadd.f32 0.0, %v126
    %v128 = vpop.f32.mrf.mxu0
    %129 = vdwg.mxu0
    %p130 = scmp.eq.s32.totalorder 0, 0
    // Predicated region
    $region22: #{tpu_custom_call.1} parent=1 // pred_check
      %p131 = pneg %p130
    $region23: #{tpu_custom_call.1} parent=1 // pred_check_branch
      %133 = sbr.rel (%p131) target = $region25
    $region24: #{tpu_custom_call.1} parent=1 // pred_region
      %134 = vst [vmem:[#allocation2] sm:$0xff] %v127
    $region25: #{tpu_custom_call.1} parent=1 // pred_fallthru
      _
    %p135 = scmp.ne.s32.totalorder 0, 0
    // Predicated region
    $region26: #{tpu_custom_call.1} parent=1 // pred_check
      %p136 = pneg %p135
    $region27: #{tpu_custom_call.1} parent=1 // pred_check_branch
      %138 = sbr.rel (%p136) target = $region29
    $region28: #{tpu_custom_call.1} parent=1 // pred_region
      %v139 = vld [vmem:[#allocation2] sm:$0xff]
      %v140 = vadd.f32 %v139, %v127
      %141 = vst [vmem:[#allocation2] sm:$0xff] %v140
    $region29: #{tpu_custom_call.1} parent=1 // pred_fallthru
      _
    // Predicated region
    $region30: #{tpu_custom_call.1} parent=1 // pred_check
      %p142 = pneg %p130
    $region31: #{tpu_custom_call.1} parent=1 // pred_check_branch
      %144 = sbr.rel (%p142) target = $region33
    $region32: #{tpu_custom_call.1} parent=1 // pred_region
      %v145 = vld [vmem:[#allocation2] sm:$0xff]
      %v146 = vld [vmem:[%s3] sm:$0x1]
      %v148 = vlaneseq
      %v149 = vshrl.u32 %v148, 7
      %v150 = vsub.s32 0, %v149
      %v151 = vrot.slane %v146, %v150
      %v153 = vadd.f32 %v145, %v151
      %154 = vst [vmem:[#allocation10] sm:$0xff] %v153
    $region33: #{tpu_custom_call.1} parent=1 // pred_fallthru
      _
    // Predicated region
    $region34: #{tpu_custom_call.1} parent=1 // pred_check
      _
    $region35: #{tpu_custom_call.1} parent=1 // pred_check_branch
      %156 = sbr.rel (0) target = $region37
    $region36: #{tpu_custom_call.1} parent=1 // pred_region
      %s158 = ssub.s32 128, 128
      %159 = vsyncadd [#allocation7], %s158
      %s161 = sshll.u32 [#allocation10], 4
      %s162 = int_to_ptr.vmem [resolvable:$true] %s161
      %164 = dma.vmem_to_hbm [thread:$0]  %s162, 128, %s4, [#allocation7]
    $region37: #{tpu_custom_call.1} parent=1 // pred_fallthru
      _
    // Predicated region
    $region38: #{tpu_custom_call.1} parent=1 // pred_check
      _
    $region39: #{tpu_custom_call.1} parent=1 // pred_check_branch
      %166 = sbr.rel (0) target = $region41
    $region40: #{tpu_custom_call.1} parent=1 // pred_region
      %167 = dma.done [#allocation7], 128
    $region41: #{tpu_custom_call.1} parent=1 // pred_fallthru
      _
    %168 = vsyncpa [#allocation6], 1
    %169 = vsyncpa [#allocation9], 1
    %170 = vsyncpa [#allocation7], 1

</llo_original>
